<compile_context>
chip_gen: v7x
topology: tpu7x:2x2x1
jax: 0.10.0
libtpu: 0.0.40
codegen_flags: <defaults>
</compile_context>

<pallas_src>
import jax
import jax.numpy as jnp
from jax.experimental import pallas as pl
from jax.experimental.pallas import tpu as pltpu

_LANE = 128


def constant_broadcast_kernel(v_ref, o_ref):
    # v_ref: (1, tv) slice of the flattened constant (resident across the batch
    # grid axis); o_ref: (tb, tv) output tile. The broadcast body is hidden
    # under the output writeback DMA at mem-bound, so keep it trivial.
    o_ref[...] = jnp.broadcast_to(v_ref[...], o_ref.shape)


def constant_network_forward(
    inputs,
    value,
    *,
    target_block_bytes=2 << 20,   # ~2 MiB output blocks: >=85% of HBM roofline
    min_pallas_bytes=1 << 20,     # below this, XLA broadcast beats kernel launch cost
    force_kernel=False,
):
    """ConstantNetwork.forward: value broadcast to (inputs.shape[0], *value.shape).

    `inputs` only contributes its leading (batch) dimension, matching the
    PyTorch module (buffer vs Parameter does not change the forward pass).
    """
    B = int(inputs.shape[0])
    value_shape = tuple(int(d) for d in value.shape)
    out_full_shape = (B,) + value_shape
    dtype = value.dtype
    itemsize = dtype.itemsize

    V = 1
    for d in value_shape:
        V *= d
    total_bytes = B * V * itemsize

    # Degenerate / tiny outputs: the fixed pallas_call launch + pipeline setup
    # cost dwarfs a small fill; XLA's native broadcast is strictly faster.
    if B == 0 or V == 0 or (not force_kernel and total_bytes < min_pallas_bytes):
        return jnp.broadcast_to(value[None], out_full_shape)

    v2d = value.reshape(1, V)

    # Packed sublane count per dtype (8 f32, 16 bf16, 32 int8/fp8): keeps
    # batch tiles from causing masked sublane stores on partial packing.
    sublane = 8 * max(1, 4 // itemsize)

    # ---- value-axis (lane) tile -------------------------------------------
    row_bytes = V * itemsize
    if V <= _LANE:
        tv = V  # too narrow to split; block last dim == full array dim (legal)
    elif V % _LANE == 0 and row_bytes <= target_block_bytes:
        tv = V  # whole flattened value per block, already lane-dense
    else:
        # Lane-dense chunks: largest multiple of 128 lanes that keeps even a
        # minimum-height (sublane, tv) block within the byte budget. Only the
        # final V tile can be masked when V is not a multiple of 128.
        tv = (target_block_bytes // (sublane * itemsize)) // _LANE * _LANE
        tv = int(min(max(_LANE, tv), (V // _LANE) * _LANE))
    nv = pl.cdiv(V, tv)

    # ---- batch-axis (sublane) tile ----------------------------------------
    tb_budget = target_block_bytes // (tv * itemsize)
    tb_budget = max(sublane, (tb_budget // sublane) * sublane)
    if tb_budget >= B:
        if B >= 2 * sublane:
            # Keep >=2 batch grid steps so v7x's two TensorCores both get work
            # (no-op on single-TC v5e / v6e).
            half = (B + 1) // 2
            tb = min(B, ((half + sublane - 1) // sublane) * sublane)
        else:
            tb = B  # full array dim (legal even if < 8)
    else:
        tb = tb_budget
    nb = pl.cdiv(B, tb)

    out_block_bytes = tb * tv * itemsize

    out = pl.pallas_call(
        constant_broadcast_kernel,
        out_shape=jax.ShapeDtypeStruct((B, V), dtype),
        grid_spec=pltpu.PrefetchScalarGridSpec(
            num_scalar_prefetch=0,
            grid=(nb, nv),
            in_specs=[
                # Tiny constant slice; same batch index every step -> resident.
                pl.BlockSpec((1, tv), lambda i, j: (0, j)),
            ],
            out_specs=pl.BlockSpec((tb, tv), lambda i, j: (i, j)),
        ),
        compiler_params=pltpu.CompilerParams(
            dimension_semantics=("parallel", "parallel"),
            # Explicit scoped-VMEM cap: above v5e's 16 MiB default so 2 MiB
            # double-buffered blocks fit comfortably, well under v7x's 64 MiB.
            vmem_limit_bytes=32 << 20,
        ),
        # Bandwidth-only op: let XLA overlap it with surrounding compute.
        cost_estimate=pl.CostEstimate(
            flops=0,
            transcendentals=0,
            bytes_accessed=total_bytes + V * itemsize,
        ),
    )(v2d)

    del out_block_bytes  # (kept for readability of the sizing math above)
    return out.reshape(out_full_shape)


if __name__ == "__main__":
    key = jax.random.PRNGKey(0)
    k_v, k_x = jax.random.split(key)

    VALUE_SHAPE = (4, 32)  # flattened V = 128 -> fully lane-dense stores
    value = jax.random.normal(k_v, VALUE_SHAPE, jnp.float32)

    # (1) Pallas path (forced at small scale): B=20 exercises a multi-step
    #     batch grid with a masked partial final block (no pad/slice copy).
    B = 20
    inputs = jax.random.normal(k_x, (B, 16), jnp.float32)
    y = constant_network_forward(inputs, value, force_kernel=True)
    y = jax.block_until_ready(y)
    y_ref = jnp.broadcast_to(value[None], (B,) + VALUE_SHAPE)
    assert y.shape == (B,) + VALUE_SHAPE
    assert jnp.array_equal(y, y_ref)

    # (2) Tiny batch takes the auto short-circuit (plain XLA broadcast) path.
    B2 = 2
    inputs2 = jax.random.normal(k_x, (B2, 16), jnp.float32)
    y2 = jax.block_until_ready(constant_network_forward(inputs2, value))
    assert jnp.array_equal(y2, jnp.broadcast_to(value[None], (B2,) + VALUE_SHAPE))

    print("KERNEL_OK")
</pallas_src>

<mosaic_0001>
module attributes {stable_mosaic.version = 11 : i64} {
  func.func @constant_broadcast_kernel(%arg0: i32, %arg1: i32, %arg2: memref<1x128xf32, #tpu.memory_space<vmem>>, %arg3: memref<16x128xf32, #tpu.memory_space<vmem>>) attributes {dimension_semantics = [#tpu.dimension_semantics<parallel>, #tpu.dimension_semantics<parallel>], iteration_bounds = array<i64: 2, 1>, scalar_prefetch = 0 : i64, scratch_operands = 0 : i64, tpu.core_type = #tpu.core_type<tc>, window_params = [{transform_indices = @transform_0, window_bounds = array<i64: 1, 128>}, {transform_indices = @transform_1, window_bounds = array<i64: 16, 128>}]} {
    %c0 = arith.constant 0 : index
    %c0_0 = arith.constant 0 : index
    %0 = vector.load %arg2[%c0, %c0_0] : memref<1x128xf32, #tpu.memory_space<vmem>>, vector<1x128xf32>
    %1 = vector.shape_cast %0 : vector<1x128xf32> to vector<1x128xf32>
    %2 = vector.broadcast %1 : vector<1x128xf32> to vector<16x128xf32>
    %c0_1 = arith.constant 0 : index
    %c0_2 = arith.constant 0 : index
    %3 = vector.load %arg3[%c0_1, %c0_2] : memref<16x128xf32, #tpu.memory_space<vmem>>, vector<16x128xf32>
    tpu.vector_store %arg3[%c0_1, %c0_2], %2 {strides = array<i32>} : memref<16x128xf32, #tpu.memory_space<vmem>>, vector<16x128xf32>,
    return
  }
  func.func @transform_0(%arg0: i32, %arg1: i32) -> (i32, i32) {
    %c0_i32 = arith.constant 0 : i32
    %c0_i32_0 = arith.constant 0 : i32
    return %c0_i32, %arg1 : i32, i32
  }
  func.func @transform_1(%arg0: i32, %arg1: i32) -> (i32, i32) {
    %c0_i32 = arith.constant 0 : i32
    return %arg0, %arg1 : i32, i32
  }
}

</mosaic_0001>

<llo_original>
// kernel: tpu_custom_call.1
$region0: #{tpu_custom_call.1}
  #allocation0 [shape = 'u32[]', space=smem, size = 0x4, offset = 0x4, fixed_abs, tag = 'smem constant byte address 0x4 - core index']
  #allocation1 [shape = 'u32[144,128]{1,0:T(1,128)}', space=vmem, size = 0x12000, scoped, tag = 'internal scratch']
  %s0 = inlined_call_operand.hbm [shape: f32[1,128], index: 0, kind: input, shape index: {}]
  %s1 = inlined_call_operand.hbm [shape: f32[20,128], index: 1, kind: output, shape index: {}]
  %s2 = sld [smem:[#allocation0]]
  $region41: #{tpu_custom_call.1} parent=0
    _
  %s4 = ssub.s32 1, %s2
  %s5 = scalar_select 0, %s4, %s2
  $region1: #{tpu_custom_call.1} parent=0
    #allocation2 [shape = 'u8[512]{0}', space=vmem, size = 0x400, scoped, tag = 'input window, operand 0, single buffered']
    #allocation3 [shape = 's32[2]{0}', space=sflag, size = 0x8, scoped, tag = 'scoped memory for tpu_custom_call.1']
    #allocation4 [shape = 's32[2]{0}', space=sflag, size = 0x8, scoped, tag = 'scoped memory for tpu_custom_call.1']
    #allocation5 [shape = 'u8[16384]{0}', space=vmem, size = 0x4000, scoped, tag = 'output window, operand 0']
    %6 = vsyncpa [#allocation3], 0
    %7 = vsyncpa [#allocation4], 0
    %s8 = scalar_lea.sflag [#allocation4], 1
    %9 = vsyncpa %s8, 0
    loop: start=0, step=1, limit=4
    $region2: #{tpu_custom_call.1} parent=1 // loop_pre_header
      _
    $region3: #{tpu_custom_call.1} parent=1 // loop_header
      %s11 = sphi 0, %s15
      %p12 = scmp.ge.s32.totalorder %s11, 4
      %s18 = sphi 0, %s30
      %s19 = sphi 0, %s26
      %s20 = sphi 0, %s18
      %s21 = sphi 0, %s19
      %s22 = sphi 0, %s20
      %s23 = sphi 0, %s21
      %s33 = sphi 0, %s35
      %s36 = sphi 0, %s33
      %s37 = sphi 0, %s36
      %s53 = sphi 0, %s37
      %s61 = sphi 0, %s63
      %s64 = sphi 0, %s61
      %s65 = sphi 0, %s64
      %s81 = sphi 0, %s65
    $region4: #{tpu_custom_call.1} parent=1 // loop_header_branch
      %14 = sbr.rel (%p12) target = $region8
    $region5: #{tpu_custom_call.1} parent=1 // loop_body
      %s16 = ssub.s32 %s11, 1
      %s17 = ssub.s32 %s11, 2
      %s24 = sadd.s32 1, %s19
      %p25 = scmp.ge.s32.totalorder %s24, 1
      %s26 = scalar_select %p25, 0, %s24
      %s27 = sadd.s32 1, %s18
      %s28 = scalar_select %p25, %s27, %s18
      %p29 = scmp.ge.s32.totalorder %s28, 2
      %s30 = scalar_select %p29, 0, %s28
      %s31 = ssub.s32 %s19, %s26
      %p32 = scmp.eq.s32.totalorder %s31, 0
      %s34 = sadd.s32 %s33, 1
      %s35 = scalar_select %p32, %s33, %s34
      %p38 = pneg %p32
      %p39 = scmp.eq.s32.totalorder %s11, 1
      %p40 = por %p38, %p39
      %p41 = scmp.ne.s32.totalorder %s33, %s36
      %p42 = scmp.eq.s32.totalorder %s11, 0
      %p43 = por %p41, %p42
      %p44 = scmp.ne.s32.totalorder %s33, %s36
      %p45 = scmp.eq.s32.totalorder %s16, 1
      %p46 = por %p44, %p45
      %p47 = scmp.ne.s32.totalorder %s36, %s37
      %p48 = scmp.eq.s32.totalorder %s16, 0
      %p49 = por %p47, %p48
      %p50 = scmp.ne.s32.totalorder %s36, %s37
      %p51 = scmp.eq.s32.totalorder %s17, 1
      %p52 = por %p50, %p51
      %p54 = scmp.ne.s32.totalorder %s37, %s53
      %p55 = scmp.eq.s32.totalorder %s17, 0
      %p56 = por %p54, %p55
      %s57 = ssub.s32 %s18, %s30
      %s58 = ssub.s32 %s19, %s26
      %s59 = sor.u32 %s57, %s58
      %p60 = scmp.eq.s32.totalorder %s59, 0
      %s62 = sadd.s32 %s61, 1
      %s63 = scalar_select %p60, %s61, %s62
      %p66 = pneg %p60
      %p67 = scmp.eq.s32.totalorder %s11, 1
      %p68 = por %p66, %p67
      %p69 = scmp.ne.s32.totalorder %s61, %s64
      %p70 = scmp.eq.s32.totalorder %s11, 0
      %p71 = por %p69, %p70
      %p72 = scmp.ne.s32.totalorder %s61, %s64
      %p73 = scmp.eq.s32.totalorder %s16, 1
      %p74 = por %p72, %p73
      %p75 = scmp.ne.s32.totalorder %s64, %s65
      %p76 = scmp.eq.s32.totalorder %s16, 0
      %p77 = por %p75, %p76
      %p78 = scmp.ne.s32.totalorder %s64, %s65
      %p79 = scmp.eq.s32.totalorder %s17, 1
      %p80 = por %p78, %p79
      %p82 = scmp.ne.s32.totalorder %s65, %s81
      %p83 = scmp.eq.s32.totalorder %s17, 0
      %p84 = por %p82, %p83
      %p85 = scmp.le.s32.totalorder 1, %s11
      %p86 = scmp.lt.s32.totalorder %s11, 3
      %p87 = pnand %p85, %p86
      %p88 = pneg %p87
      // Predicated region
      $region9: #{tpu_custom_call.1} parent=5 // pred_check
        _
      $region10: #{tpu_custom_call.1} parent=5 // pred_check_branch
        %90 = sbr.rel (%p87) target = $region12
      $region11: #{tpu_custom_call.1} parent=5 // pred_region
        %s91 = ssub.s32 %s11, 1
        // Predicated region
        $region13: #{tpu_custom_call.1} parent=11 // pred_check
          %p92 = pneg %p49
        $region14: #{tpu_custom_call.1} parent=11 // pred_check_branch
          %94 = sbr.rel (%p92) target = $region16
        $region15: #{tpu_custom_call.1} parent=11 // pred_region
          %s96 = ssub.s32 16, 16
          %97 = vsyncadd [#allocation3], %s96
          %s98 = smul.addr %s21, 16
          %s99 = scalar_lea.hbm %s0, %s98
          %s101 = sshll.u32 [#allocation2], 4
          %s102 = int_to_ptr.vmem [resolvable:$true] %s101
          %104 = dma.hbm_to_vmem [thread:$0]  %s99, 16, %s102, [#allocation3]
        $region16: #{tpu_custom_call.1} parent=11 // pred_fallthru
          _
      $region12: #{tpu_custom_call.1} parent=5 // pred_fallthru
        _
      %p105 = scmp.lt.s32.totalorder %s11, 2
      // Predicated region
      $region17: #{tpu_custom_call.1} parent=5 // pred_check
        %p106 = pneg %p105
      $region18: #{tpu_custom_call.1} parent=5 // pred_check_branch
        %108 = sbr.rel (%p106) target = $region20
      $region19: #{tpu_custom_call.1} parent=5 // pred_region
        _
      $region20: #{tpu_custom_call.1} parent=5 // pred_fallthru
        _
      %p109 = scmp.le.s32.totalorder 1, %s11
      %p110 = scmp.lt.s32.totalorder %s11, 3
      %p111 = pnand %p109, %p110
      %p112 = pneg %p111
      // Predicated region
      $region21: #{tpu_custom_call.1} parent=5 // pred_check
        _
      $region22: #{tpu_custom_call.1} parent=5 // pred_check_branch
        %114 = sbr.rel (%p111) target = $region24
      $region23: #{tpu_custom_call.1} parent=5 // pred_region
        %s115 = ssub.s32 %s11, 1
        // Predicated region
        $region25: #{tpu_custom_call.1} parent=23 // pred_check
          %p116 = pneg %p49
        $region26: #{tpu_custom_call.1} parent=23 // pred_check_branch
          %118 = sbr.rel (%p116) target = $region28
        $region27: #{tpu_custom_call.1} parent=23 // pred_region
          %119 = dma.done [#allocation3], 16
        $region28: #{tpu_custom_call.1} parent=23 // pred_fallthru
          _
        %p120 = pneg %p49
        %p121 = pneg %p46
        %p122 = pneg %p77
        %p123 = pneg %p74
        %s124 = sand.u32 %s64, 1
        %s125 = scalar_lea.sflag [#allocation4], %s124
        %s126 = sand.u32 %s64, 1
        %s127 = smul.addr %s126, 16
        %s128 = scalar_lea.vmem [#allocation5], %s127
        %s129 = smul.u32 2, %s20
        %s130 = ssub.s32 3, %s129
        %p131 = scmp.lt.s32.totalorder %s130, 2
        %s132 = scalar_select %p131, %s130, 2
        %s133 = smul.u32 128, %s132
        %v134 = vld [vmem:[#allocation2] sm:$0x1]
        %v136 = vlaneseq
        %v137 = vshrl.u32 %v136, 7
        %v138 = vsub.s32 0, %v137
        %v139 = vrot.slane %v134, %v138
        %141 = vst [vmem:[%s128] sm:$0xff] %v139
        %142 = vst [vmem:[%s128 + $0x8] sm:$0xff] %v139
        %s143 = sand.u32 %s64, 1
        %s144 = scalar_lea.sflag [#allocation4], %s143
        %s145 = sand.u32 %s64, 1
        %s146 = smul.addr %s145, 16
        %s147 = scalar_lea.vmem [#allocation5], %s146
        // Predicated region
        $region29: #{tpu_custom_call.1} parent=23 // pred_check
          %p148 = pneg %p74
        $region30: #{tpu_custom_call.1} parent=23 // pred_check_branch
          %150 = sbr.rel (%p148) target = $region32
        $region31: #{tpu_custom_call.1} parent=23 // pred_region
          %s151 = smul.u32 2, %s20
          %s152 = ssub.s32 3, %s151
          %p153 = scmp.lt.s32.totalorder %s152, 2
          %s154 = scalar_select %p153, %s152, 2
          %s155 = smul.u32 128, %s154
          %s157 = ssub.s32 256, %s155
          %158 = vsyncadd %s144, %s157
          %p159 = scmp.ne.s32.totalorder 0, %s155
          %s160 = sadd.s32 %s21, %s151
          %s161 = smul.addr %s160, 128
          %s162 = scalar_lea.hbm %s1, %s161
          %s163 = smul.u32 8, %s154
          %s164 = sshll.u32 %s147, 4
          %s165 = int_to_ptr.vmem [resolvable:$true] %s164
          %s166 = sshll.u32 %s163, 4
          %170 = dma.vmem_to_hbm [thread:$0]  (%p159), %s165, %s166, %s162, %s144, 128, 128, 8
        $region32: #{tpu_custom_call.1} parent=23 // pred_fallthru
          _
      $region24: #{tpu_custom_call.1} parent=5 // pred_fallthru
        _
      %p171 = scmp.le.s32.totalorder 2, %s11
      // Predicated region
      $region33: #{tpu_custom_call.1} parent=5 // pred_check
        %p172 = pneg %p171
      $region34: #{tpu_custom_call.1} parent=5 // pred_check_branch
        %174 = sbr.rel (%p172) target = $region36
      $region35: #{tpu_custom_call.1} parent=5 // pred_region
        %s175 = ssub.s32 %s11, 2
        // Predicated region
        $region37: #{tpu_custom_call.1} parent=35 // pred_check
          %p176 = pneg %p80
        $region38: #{tpu_custom_call.1} parent=35 // pred_check_branch
          %178 = sbr.rel (%p176) target = $region40
        $region39: #{tpu_custom_call.1} parent=35 // pred_region
          %s179 = sand.u32 %s65, 1
          %s180 = scalar_lea.sflag [#allocation4], %s179
          %s181 = sand.u32 %s65, 1
          %s182 = smul.addr %s181, 16
          %s183 = scalar_lea.vmem [#allocation5], %s182
          %184 = dma.done %s180, 256
        $region40: #{tpu_custom_call.1} parent=35 // pred_fallthru
          _
      $region36: #{tpu_custom_call.1} parent=5 // pred_fallthru
        _
    $region6: #{tpu_custom_call.1} parent=1 // loop_footer
      %s15 = sadd.s32 1, %s11
    $region7: #{tpu_custom_call.1} parent=1 // loop_footer_branch
      %10 = sbr.rel target = $region3
    $region8: #{tpu_custom_call.1} parent=1 // loop_exit
      _
    %185 = vsyncpa [#allocation3], 1
    %s186 = scalar_lea.sflag [#allocation3], 1
    %187 = vsyncpa %s186, 1
    %188 = vsyncpa [#allocation4], 1
    %s189 = scalar_lea.sflag [#allocation4], 1
    %190 = vsyncpa %s189, 1

</llo_original>
